<compile_context>
chip_gen: v7x
topology: tpu7x:2x2x1
jax: 0.10.0
libtpu: 0.0.40
codegen_flags: <defaults>
</compile_context>

<pallas_src>
import jax
import jax.numpy as jnp
from jax.experimental import pallas as pl
from jax.experimental.pallas import tpu as pltpu

LANE = 128


def _round_up(n, m):
    return ((n + m - 1) // m) * m


def _pick_batch_tile(B, tile_b):
    """Batch tile: multiple of 16 (bf16 sublane packing).

    Small batches (<= tile_b): a single tile covering round_up(B, 16) rows.
    Large batches: an even tile count (v7x has 2 TensorCores) chosen so the
    last tile's padding is a few percent at most.
    """
    B16 = _round_up(max(B, 16), 16)
    if B16 <= tile_b:
        return B16
    n = pl.cdiv(B16, tile_b)
    if n % 2:                       # even tile count -> both TCs busy on v7x
        n += 1
    return _round_up(pl.cdiv(B16, n), 16)


def mlp_kernel(x_ref, w1_ref, b1_ref, w2_ref, b2_ref, w3_ref, b3_ref, o_ref):
    # x_ref: (TB, IN) f32 batch tile; cast to bf16 in-kernel (VPU op, hidden
    # under the DMA/MXU). Weights bf16, biases f32, accumulation f32.
    x = x_ref[...].astype(jnp.bfloat16)

    # Layer 1: Linear(IN -> MID) + ReLU
    h1 = jnp.dot(x, w1_ref[...], preferred_element_type=jnp.float32)
    h1 = jnp.maximum(h1 + b1_ref[...], 0.0)

    # Layer 2: Linear(MID -> MID) + ReLU
    h2 = jnp.dot(h1.astype(jnp.bfloat16), w2_ref[...],
                 preferred_element_type=jnp.float32)
    h2 = jnp.maximum(h2 + b2_ref[...], 0.0)

    # Layer 3: Linear(MID -> OUT_P), no activation (N lane-padded to 128)
    out = jnp.dot(h2.astype(jnp.bfloat16), w3_ref[...],
                  preferred_element_type=jnp.float32)
    o_ref[...] = (out + b3_ref[...]).astype(o_ref.dtype)


def prepare_params(params):
    """One-time parameter prep, hoisted out of the forward path.

    Casts weights to bf16, keeps biases f32, pads the last layer's N
    dimension to a lane-dense multiple of 128.
    """
    OUT = params["w3"].shape[1]
    OUT_P = _round_up(OUT, LANE)
    pad_n = OUT_P - OUT
    return {
        "w1": params["w1"].astype(jnp.bfloat16),
        "b1": params["b1"].reshape(1, -1).astype(jnp.float32),
        "w2": params["w2"].astype(jnp.bfloat16),
        "b2": params["b2"].reshape(1, -1).astype(jnp.float32),
        "w3": jnp.pad(params["w3"], ((0, 0), (0, pad_n))).astype(jnp.bfloat16),
        "b3": jnp.pad(params["b3"].reshape(1, -1),
                      ((0, 0), (0, pad_n))).astype(jnp.float32),
    }


def contrastive_encoder(x, prep, out_features, *, tile_b=512):
    """Fused forward: Linear(IN,128) -> ReLU -> Linear(128,128) -> ReLU
    -> Linear(128, out_features).

    x:             (B, input_size) float32
    prep:          output of prepare_params()
    out_features:  the (unpadded) output width of the last layer
    Returns (B, out_features) float32.
    """
    B, IN = x.shape
    MID = prep["w1"].shape[1]
    OUT_P = prep["w3"].shape[1]

    tb = _pick_batch_tile(B, tile_b)
    n_tiles = pl.cdiv(B, tb)
    B_work = n_tiles * tb           # rows actually pushed through the MXU

    # Replicated (grid-invariant) blocks for weights / biases.
    rep = lambda shape: pl.BlockSpec(shape, lambda i: (0, 0))

    # Advisory cost estimate for XLA's scheduler.
    flops = 2 * B_work * (IN * MID + MID * MID + MID * OUT_P)
    bytes_accessed = (
        x.size * 4
        + (prep["w1"].size + prep["w2"].size + prep["w3"].size) * 2
        + (prep["b1"].size + prep["b2"].size + prep["b3"].size) * 4
        + B * OUT_P * 4
    )
    cost = pl.CostEstimate(flops=flops, transcendentals=0,
                           bytes_accessed=bytes_accessed)

    # VMEM budget: double-buffered x/out tiles + weights/biases + headroom
    # for the f32 intermediate activations; 2x margin, floor 8 MiB, capped
    # at half the chip generation's VMEM capacity (64 MiB on v7x, 128 MiB
    # on v5e/v6e).
    vmem_bytes = (
        2 * tb * IN * 4                                             # x (f32)
        + 2 * tb * OUT_P * 4                                        # out (f32)
        + 2 * 2 * (prep["w1"].size + prep["w2"].size + prep["w3"].size)
        + 2 * 4 * (prep["b1"].size + prep["b2"].size + prep["b3"].size)
        + 4 * tb * MID * 4                                          # h1/h2
    )
    try:
        vmem_cap = int(pltpu.get_tpu_info().vmem_capacity_bytes)
    except Exception:
        vmem_cap = 64 * 1024 * 1024
    vmem_limit = int(min(max(2 * vmem_bytes, 8 * 1024 * 1024), vmem_cap // 2))

    out = pl.pallas_call(
        mlp_kernel,
        out_shape=jax.ShapeDtypeStruct((B, OUT_P), jnp.float32),
        grid_spec=pltpu.PrefetchScalarGridSpec(
            num_scalar_prefetch=0,
            grid=(n_tiles,),
            in_specs=[
                pl.BlockSpec((tb, IN), lambda i: (i, 0)),   # x tile (f32)
                rep((IN, MID)),      # w1
                rep((1, MID)),       # b1
                rep((MID, MID)),     # w2
                rep((1, MID)),       # b2
                rep((MID, OUT_P)),   # w3 (N padded to 128)
                rep((1, OUT_P)),     # b3 (N padded to 128)
            ],
            out_specs=pl.BlockSpec((tb, OUT_P), lambda i: (i, 0)),
        ),
        compiler_params=pltpu.CompilerParams(
            dimension_semantics=("parallel",),
            vmem_limit_bytes=vmem_limit),
        cost_estimate=cost,
    )(x, prep["w1"], prep["b1"], prep["w2"], prep["b2"],
      prep["w3"], prep["b3"])

    # Drop the lane padding of the last layer (batch dim is already exact:
    # ragged last blocks are clipped by Pallas on the output writeback).
    return out[:, :out_features]


def init_params(key, input_size, output_size, middle_size=128):
    """Deterministic synthetic init (uniform, matching torch Linear's
    1/sqrt(fan_in) scale); weights stored as (in, out)."""
    ks = jax.random.split(key, 6)

    def lin(kw, kb, fan_in, fan_out):
        bound = 1.0 / jnp.sqrt(fan_in)
        w = jax.random.uniform(kw, (fan_in, fan_out), jnp.float32, -bound, bound)
        b = jax.random.uniform(kb, (1, fan_out), jnp.float32, -bound, bound)
        return w, b

    w1, b1 = lin(ks[0], ks[1], input_size, middle_size)
    w2, b2 = lin(ks[2], ks[3], middle_size, middle_size)
    w3, b3 = lin(ks[4], ks[5], middle_size, output_size)
    return {"w1": w1, "b1": b1, "w2": w2, "b2": b2, "w3": w3, "b3": b3}


if __name__ == "__main__":
    key = jax.random.PRNGKey(0)
    k_x, k_p = jax.random.split(key)

    batch = 300            # ragged: one 304-row tile, 4 padded rows
    input_size = 32
    output_size = 16

    x = jax.random.normal(k_x, (batch, input_size), dtype=jnp.float32)
    params = init_params(k_p, input_size, output_size)
    prep = prepare_params(params)            # one-time weight prep

    fwd = jax.jit(lambda xx: contrastive_encoder(xx, prep, output_size))
    out = jax.block_until_ready(fwd(x))
    assert out.shape == (batch, output_size)

    # Reference 1: same bf16-operand / f32-accumulate math as the kernel.
    def ref_bf16(xx):
        h1 = jnp.maximum(
            jnp.dot(xx.astype(jnp.bfloat16), params["w1"].astype(jnp.bfloat16),
                    preferred_element_type=jnp.float32) + params["b1"], 0.0)
        h2 = jnp.maximum(
            jnp.dot(h1.astype(jnp.bfloat16), params["w2"].astype(jnp.bfloat16),
                    preferred_element_type=jnp.float32) + params["b2"], 0.0)
        return jnp.dot(h2.astype(jnp.bfloat16), params["w3"].astype(jnp.bfloat16),
                       preferred_element_type=jnp.float32) + params["b3"]

    assert jnp.allclose(out, ref_bf16(x), atol=1e-2, rtol=1e-2), \
        "mismatch vs bf16 reference"

    # Reference 2 (loose): full-f32 math, bounds the bf16 quantization error.
    h1f = jnp.maximum(x @ params["w1"] + params["b1"], 0.0)
    h2f = jnp.maximum(h1f @ params["w2"] + params["b2"], 0.0)
    reff = h2f @ params["w3"] + params["b3"]
    assert jnp.allclose(out, reff, atol=5e-2, rtol=5e-2), \
        "mismatch vs f32 reference"

    # Multi-tile path: 1200 rows -> 4 tiles of 304 (even count, 16 pad rows).
    x_big = jax.random.normal(k_x, (1200, input_size), dtype=jnp.float32)
    out_big = jax.block_until_ready(fwd(x_big))
    assert out_big.shape == (1200, output_size)
    assert jnp.allclose(out_big, ref_bf16(x_big), atol=1e-2, rtol=1e-2), \
        "mismatch vs bf16 reference (multi-tile)"

    print("KERNEL_OK")
</pallas_src>

<mosaic_0001>
module attributes {stable_mosaic.version = 11 : i64} {
  func.func @mlp_kernel(%arg0: i32, %arg1: memref<304x32xf32, #tpu.memory_space<vmem>>, %arg2: memref<32x128xbf16, #tpu.memory_space<vmem>>, %arg3: memref<1x128xf32, #tpu.memory_space<vmem>>, %arg4: memref<128x128xbf16, #tpu.memory_space<vmem>>, %arg5: memref<1x128xf32, #tpu.memory_space<vmem>>, %arg6: memref<128x128xbf16, #tpu.memory_space<vmem>>, %arg7: memref<1x128xf32, #tpu.memory_space<vmem>>, %arg8: memref<304x128xf32, #tpu.memory_space<vmem>>) attributes {dimension_semantics = [#tpu.dimension_semantics<parallel>], iteration_bounds = array<i64: 1>, scalar_prefetch = 0 : i64, scratch_operands = 0 : i64, tpu.core_type = #tpu.core_type<tc>, window_params = [{transform_indices = @transform_0, window_bounds = array<i64: 304, 32>}, {pipeline_mode = #tpu.pipeline_mode<synchronous>, transform_indices = @transform_1, window_bounds = array<i64: 32, 128>}, {pipeline_mode = #tpu.pipeline_mode<synchronous>, transform_indices = @transform_2, window_bounds = array<i64: 1, 128>}, {pipeline_mode = #tpu.pipeline_mode<synchronous>, transform_indices = @transform_3, window_bounds = array<i64: 128, 128>}, {pipeline_mode = #tpu.pipeline_mode<synchronous>, transform_indices = @transform_4, window_bounds = array<i64: 1, 128>}, {pipeline_mode = #tpu.pipeline_mode<synchronous>, transform_indices = @transform_5, window_bounds = array<i64: 128, 128>}, {pipeline_mode = #tpu.pipeline_mode<synchronous>, transform_indices = @transform_6, window_bounds = array<i64: 1, 128>}, {transform_indices = @transform_7, window_bounds = array<i64: 304, 128>}]} {
    %c0 = arith.constant 0 : index
    %c0_0 = arith.constant 0 : index
    %0 = vector.load %arg1[%c0, %c0_0] : memref<304x32xf32, #tpu.memory_space<vmem>>, vector<304x32xf32>
    %1 = arith.truncf %0 : vector<304x32xf32> to vector<304x32xbf16>
    %c0_1 = arith.constant 0 : index
    %c0_2 = arith.constant 0 : index
    %2 = vector.load %arg2[%c0_1, %c0_2] : memref<32x128xbf16, #tpu.memory_space<vmem>>, vector<32x128xbf16>
    %cst = arith.constant dense<0.000000e+00> : vector<304x128xf32>
    %3 = tpu.matmul %1, %2, %cst {dimension_numbers = #tpu.dot_dimension_numbers<[1], [0], [0], [1], [0, 0, 1, 1], [], []>} : vector<304x32xbf16>, vector<32x128xbf16>, vector<304x128xf32> -> vector<304x128xf32>
    %c0_3 = arith.constant 0 : index
    %c0_4 = arith.constant 0 : index
    %4 = vector.load %arg3[%c0_3, %c0_4] : memref<1x128xf32, #tpu.memory_space<vmem>>, vector<1x128xf32>
    %5 = vector.broadcast %4 : vector<1x128xf32> to vector<304x128xf32>
    %6 = arith.addf %3, %5 : vector<304x128xf32>
    %cst_5 = arith.constant 0.000000e+00 : f32
    %7 = vector.broadcast %cst_5 : f32 to vector<304x128xf32>
    %8 = arith.maximumf %6, %7 : vector<304x128xf32>
    %9 = arith.truncf %8 : vector<304x128xf32> to vector<304x128xbf16>
    %c0_6 = arith.constant 0 : index
    %c0_7 = arith.constant 0 : index
    %10 = vector.load %arg4[%c0_6, %c0_7] : memref<128x128xbf16, #tpu.memory_space<vmem>>, vector<128x128xbf16>
    %cst_8 = arith.constant dense<0.000000e+00> : vector<304x128xf32>
    %11 = tpu.matmul %9, %10, %cst_8 {dimension_numbers = #tpu.dot_dimension_numbers<[1], [0], [0], [1], [0, 0, 1, 1], [], []>} : vector<304x128xbf16>, vector<128x128xbf16>, vector<304x128xf32> -> vector<304x128xf32>
    %c0_9 = arith.constant 0 : index
    %c0_10 = arith.constant 0 : index
    %12 = vector.load %arg5[%c0_9, %c0_10] : memref<1x128xf32, #tpu.memory_space<vmem>>, vector<1x128xf32>
    %13 = vector.broadcast %12 : vector<1x128xf32> to vector<304x128xf32>
    %14 = arith.addf %11, %13 : vector<304x128xf32>
    %cst_11 = arith.constant 0.000000e+00 : f32
    %15 = vector.broadcast %cst_11 : f32 to vector<304x128xf32>
    %16 = arith.maximumf %14, %15 : vector<304x128xf32>
    %17 = arith.truncf %16 : vector<304x128xf32> to vector<304x128xbf16>
    %c0_12 = arith.constant 0 : index
    %c0_13 = arith.constant 0 : index
    %18 = vector.load %arg6[%c0_12, %c0_13] : memref<128x128xbf16, #tpu.memory_space<vmem>>, vector<128x128xbf16>
    %cst_14 = arith.constant dense<0.000000e+00> : vector<304x128xf32>
    %19 = tpu.matmul %17, %18, %cst_14 {dimension_numbers = #tpu.dot_dimension_numbers<[1], [0], [0], [1], [0, 0, 1, 1], [], []>} : vector<304x128xbf16>, vector<128x128xbf16>, vector<304x128xf32> -> vector<304x128xf32>
    %c0_15 = arith.constant 0 : index
    %c0_16 = arith.constant 0 : index
    %20 = vector.load %arg7[%c0_15, %c0_16] : memref<1x128xf32, #tpu.memory_space<vmem>>, vector<1x128xf32>
    %21 = vector.broadcast %20 : vector<1x128xf32> to vector<304x128xf32>
    %22 = arith.addf %19, %21 : vector<304x128xf32>
    %c0_17 = arith.constant 0 : index
    %c0_18 = arith.constant 0 : index
    %23 = vector.load %arg8[%c0_17, %c0_18] : memref<304x128xf32, #tpu.memory_space<vmem>>, vector<304x128xf32>
    tpu.vector_store %arg8[%c0_17, %c0_18], %22 {strides = array<i32>} : memref<304x128xf32, #tpu.memory_space<vmem>>, vector<304x128xf32>,
    return
  }
  func.func @transform_0(%arg0: i32) -> (i32, i32) {
    %c0_i32 = arith.constant 0 : i32
    %c0_i32_0 = arith.constant 0 : i32
    return %arg0, %c0_i32 : i32, i32
  }
  func.func @transform_1(%arg0: i32) -> (i32, i32) {
    %c0_i32 = arith.constant 0 : i32
    %c0_i32_0 = arith.constant 0 : i32
    %c0_i32_1 = arith.constant 0 : i32
    return %c0_i32, %c0_i32_0 : i32, i32
  }
  func.func @transform_2(%arg0: i32) -> (i32, i32) {
    %c0_i32 = arith.constant 0 : i32
    %c0_i32_0 = arith.constant 0 : i32
    %c0_i32_1 = arith.constant 0 : i32
    return %c0_i32, %c0_i32_0 : i32, i32
  }
  func.func @transform_3(%arg0: i32) -> (i32, i32) {
    %c0_i32 = arith.constant 0 : i32
    %c0_i32_0 = arith.constant 0 : i32
    %c0_i32_1 = arith.constant 0 : i32
    return %c0_i32, %c0_i32_0 : i32, i32
  }
  func.func @transform_4(%arg0: i32) -> (i32, i32) {
    %c0_i32 = arith.constant 0 : i32
    %c0_i32_0 = arith.constant 0 : i32
    %c0_i32_1 = arith.constant 0 : i32
    return %c0_i32, %c0_i32_0 : i32, i32
  }
  func.func @transform_5(%arg0: i32) -> (i32, i32) {
    %c0_i32 = arith.constant 0 : i32
    %c0_i32_0 = arith.constant 0 : i32
    %c0_i32_1 = arith.constant 0 : i32
    return %c0_i32, %c0_i32_0 : i32, i32
  }
  func.func @transform_6(%arg0: i32) -> (i32, i32) {
    %c0_i32 = arith.constant 0 : i32
    %c0_i32_0 = arith.constant 0 : i32
    %c0_i32_1 = arith.constant 0 : i32
    return %c0_i32, %c0_i32_0 : i32, i32
  }
  func.func @transform_7(%arg0: i32) -> (i32, i32) {
    %c0_i32 = arith.constant 0 : i32
    %c0_i32_0 = arith.constant 0 : i32
    return %arg0, %c0_i32 : i32, i32
  }
}

</mosaic_0001>

<llo_original>
// kernel: _lambda_.1
$region0: #{_lambda_.1}
  #allocation0 [shape = 'u32[]', space=smem, size = 0x4, offset = 0x4, fixed_abs, tag = 'smem constant byte address 0x4 - core index']
  #allocation1 [shape = 'u32[144,128]{1,0:T(1,128)}', space=vmem, size = 0x12000, scoped, tag = 'internal scratch']
  %s0 = inlined_call_operand.vmem [shape: f32[300,32], index: 0, kind: input, shape index: {}]
  %s1 = inlined_call_operand.vmem [shape: bf16[32,128], index: 1, kind: input, shape index: {}]
  %s2 = inlined_call_operand.vmem [shape: f32[1,128], index: 2, kind: input, shape index: {}]
  %s3 = inlined_call_operand.vmem [shape: bf16[128,128], index: 3, kind: input, shape index: {}]
  %s4 = inlined_call_operand.vmem [shape: f32[1,128], index: 4, kind: input, shape index: {}]
  %s5 = inlined_call_operand.vmem [shape: bf16[128,128], index: 5, kind: input, shape index: {}]
  %s6 = inlined_call_operand.vmem [shape: f32[1,128], index: 6, kind: input, shape index: {}]
  %s7 = inlined_call_operand.vmem [shape: f32[300,128], index: 7, kind: output, shape index: {}]
  %s8 = sld [smem:[#allocation0]]
  $region38: #{_lambda_.1} parent=0
    _
  %s10 = ssub.s32 1, %s8
  %s11 = scalar_select 0, %s10, %s8
  // Predicated region
  $region2: #{_lambda_.1} parent=0 // pred_check
    _
  $region3: #{_lambda_.1} parent=0 // pred_check_branch
    %13 = sbr.rel (0) target = $region5
  $region4: #{_lambda_.1} parent=0 // pred_region
    _
  $region5: #{_lambda_.1} parent=0 // pred_fallthru
    _
  // Predicated region
  $region6: #{_lambda_.1} parent=0 // pred_check
    _
  $region7: #{_lambda_.1} parent=0 // pred_check_branch
    %15 = sbr.rel (0) target = $region9
  $region8: #{_lambda_.1} parent=0 // pred_region
    _
  $region9: #{_lambda_.1} parent=0 // pred_fallthru
    _
  // Predicated region
  $region10: #{_lambda_.1} parent=0 // pred_check
    _
  $region11: #{_lambda_.1} parent=0 // pred_check_branch
    %17 = sbr.rel (0) target = $region13
  $region12: #{_lambda_.1} parent=0 // pred_region
    _
  $region13: #{_lambda_.1} parent=0 // pred_fallthru
    _
  // Predicated region
  $region14: #{_lambda_.1} parent=0 // pred_check
    _
  $region15: #{_lambda_.1} parent=0 // pred_check_branch
    %19 = sbr.rel (0) target = $region17
  $region16: #{_lambda_.1} parent=0 // pred_region
    _
  $region17: #{_lambda_.1} parent=0 // pred_fallthru
    _
  // Predicated region
  $region18: #{_lambda_.1} parent=0 // pred_check
    _
  $region19: #{_lambda_.1} parent=0 // pred_check_branch
    %21 = sbr.rel (0) target = $region21
  $region20: #{_lambda_.1} parent=0 // pred_region
    _
  $region21: #{_lambda_.1} parent=0 // pred_fallthru
    _
  // Predicated region
  $region22: #{_lambda_.1} parent=0 // pred_check
    _
  $region23: #{_lambda_.1} parent=0 // pred_check_branch
    %23 = sbr.rel (0) target = $region25
  $region24: #{_lambda_.1} parent=0 // pred_region
    _
  $region25: #{_lambda_.1} parent=0 // pred_fallthru
    _
  // Predicated region
  $region26: #{_lambda_.1} parent=0 // pred_check
    _
  $region27: #{_lambda_.1} parent=0 // pred_check_branch
    %25 = sbr.rel (0) target = $region29
  $region28: #{_lambda_.1} parent=0 // pred_region
    _
  $region29: #{_lambda_.1} parent=0 // pred_fallthru
    _
  %v27 = vld [vmem:[%s0] sm:$0xff]
  %v28 = vld [vmem:[%s0 + $0x8] sm:$0xff]
  %v29 = vld [vmem:[%s0 + $0x10] sm:$0xff]
  %v30 = vld [vmem:[%s0 + $0x18] sm:$0xff]
  %v31 = vld [vmem:[%s0 + $0x20] sm:$0xff]
  %v32 = vld [vmem:[%s0 + $0x28] sm:$0xff]
  %v33 = vld [vmem:[%s0 + $0x30] sm:$0xff]
  %v34 = vld [vmem:[%s0 + $0x38] sm:$0xff]
  %v35 = vld [vmem:[%s0 + $0x40] sm:$0xff]
  %v36 = vld [vmem:[%s0 + $0x48] sm:$0xff]
  %v37 = vld [vmem:[%s0 + $0x50] sm:$0xff]
  %v38 = vld [vmem:[%s0 + $0x58] sm:$0xff]
  %v39 = vld [vmem:[%s0 + $0x60] sm:$0xff]
  %v40 = vld [vmem:[%s0 + $0x68] sm:$0xff]
  %v41 = vld [vmem:[%s0 + $0x70] sm:$0xff]
  %v42 = vld [vmem:[%s0 + $0x78] sm:$0xff]
  %v43 = vld [vmem:[%s0 + $0x80] sm:$0xff]
  %v44 = vld [vmem:[%s0 + $0x88] sm:$0xff]
  %v45 = vld [vmem:[%s0 + $0x90] sm:$0xff]
  %v46 = vld [vmem:[%s0 + $0x98] sm:$0xff]
  %v47 = vld [vmem:[%s0 + $0xa0] sm:$0xff]
  %v48 = vld [vmem:[%s0 + $0xa8] sm:$0xff]
  %v49 = vld [vmem:[%s0 + $0xb0] sm:$0xff]
  %v50 = vld [vmem:[%s0 + $0xb8] sm:$0xff]
  %v51 = vld [vmem:[%s0 + $0xc0] sm:$0xff]
  %v52 = vld [vmem:[%s0 + $0xc8] sm:$0xff]
  %v53 = vld [vmem:[%s0 + $0xd0] sm:$0xff]
  %v54 = vld [vmem:[%s0 + $0xd8] sm:$0xff]
  %v55 = vld [vmem:[%s0 + $0xe0] sm:$0xff]
  %v56 = vld [vmem:[%s0 + $0xe8] sm:$0xff]
  %v57 = vld [vmem:[%s0 + $0xf0] sm:$0xff]
  %v58 = vld [vmem:[%s0 + $0xf8] sm:$0xff]
  %v59 = vld [vmem:[%s0 + $0x100] sm:$0xff]
  %v60 = vld [vmem:[%s0 + $0x108] sm:$0xff]
  %v61 = vld [vmem:[%s0 + $0x110] sm:$0xff]
  %v62 = vld [vmem:[%s0 + $0x118] sm:$0xff]
  %v63 = vld [vmem:[%s0 + $0x120] sm:$0xff]
  %v64 = vld [vmem:[%s0 + $0x128] sm:$0xff]
  %v65 = vpack.c.bf16 %v28, %v27
  %v66 = vpack.c.bf16 %v30, %v29
  %v67 = vpack.c.bf16 %v32, %v31
  %v68 = vpack.c.bf16 %v34, %v33
  %v69 = vpack.c.bf16 %v36, %v35
  %v70 = vpack.c.bf16 %v38, %v37
  %v71 = vpack.c.bf16 %v40, %v39
  %v72 = vpack.c.bf16 %v42, %v41
  %v73 = vpack.c.bf16 %v44, %v43
  %v74 = vpack.c.bf16 %v46, %v45
  %v75 = vpack.c.bf16 %v48, %v47
  %v76 = vpack.c.bf16 %v50, %v49
  %v77 = vpack.c.bf16 %v52, %v51
  %v78 = vpack.c.bf16 %v54, %v53
  %v79 = vpack.c.bf16 %v56, %v55
  %v80 = vpack.c.bf16 %v58, %v57
  %v81 = vpack.c.bf16 %v60, %v59
  %v82 = vpack.c.bf16 %v62, %v61
  %v83 = vpack.c.bf16 %v64, %v63
  %v84 = vld [vmem:[%s1] sm:$0xf]
  %v85 = vld [vmem:[%s1 + $0x4] sm:$0xf]
  %v86 = vld [vmem:[%s1 + $0x8] sm:$0xf]
  %v87 = vld [vmem:[%s1 + $0xc] sm:$0xf]
  %v88 = vld [vmem:[%s2] sm:$0x1]
  %v90 = vlaneseq
  %v91 = vshrl.u32 %v90, 7
  %v92 = vsub.s32 0, %v91
  %v93 = vrot.slane %v88, %v92
  %v99 = vunpack.c.l.b16 %v84
  %v100 = vunpack.c.l.b16 %v85
  %v101 = vunpack.c.l.b16 %v86
  %v102 = vunpack.c.l.b16 %v87
  %v103 = vpack.c.b16 %v100, %v99
  %v104 = vpack.c.b16 %v102, %v101
  %vm107 = vcmask 261120
  %v109 = vsel %vm107, %v65, 0
  %v112 = vsel %vm107, %v66, 0
  %v115 = vsel %vm107, %v67, 0
  %v118 = vsel %vm107, %v68, 0
  %v121 = vsel %vm107, %v69, 0
  %v124 = vsel %vm107, %v70, 0
  %v127 = vsel %vm107, %v71, 0
  %v130 = vsel %vm107, %v72, 0
  %v133 = vsel %vm107, %v73, 0
  %v136 = vsel %vm107, %v74, 0
  %v139 = vsel %vm107, %v75, 0
  %v142 = vsel %vm107, %v76, 0
  %v145 = vsel %vm107, %v77, 0
  %v148 = vsel %vm107, %v78, 0
  %v151 = vsel %vm107, %v79, 0
  %v154 = vsel %vm107, %v80, 0
  %v157 = vsel %vm107, %v81, 0
  %v160 = vsel %vm107, %v82, 0
  %v163 = vsel %vm107, %v83, 0
  %165 = vmatprep.subr.bf16.mxu0 0
  %166 = vmatpush1.bf16.msra.mxu0 %v103
  %167 = vmatprep.subr.bf16.mxu0 0
  %168 = vmatpush1.bf16.msra.mxu0 %v104
  %169 = vmatprep.subr.bf16.mxu0 0
  %170 = vmatpush1.bf16.msra.mxu0 0
  %171 = vmatprep.subr.bf16.mxu0 0
  %172 = vmatpush1.bf16.msra.mxu0 0
  %173 = vmatprep.subr.bf16.mxu0 0
  %174 = vmatpush1.bf16.msra.mxu0 0
  %175 = vmatprep.subr.bf16.mxu0 0
  %176 = vmatpush1.bf16.msra.mxu0 0
  %177 = vmatprep.subr.bf16.mxu0 0
  %178 = vmatpush1.bf16.msra.mxu0 0
  %179 = vmatprep.subr.bf16.mxu0 0
  %180 = vmatpush1.bf16.msra.mxu0 0
  %181 = vmatprep.subr.bf16.mxu0 0
  %182 = vmatpush1.bf16.msra.mxu0 0
  %183 = vmatprep.subr.bf16.mxu0 0
  %184 = vmatpush1.bf16.msra.mxu0 0
  %185 = vmatprep.subr.bf16.mxu0 0
  %186 = vmatpush1.bf16.msra.mxu0 0
  %187 = vmatprep.subr.bf16.mxu0 0
  %188 = vmatpush1.bf16.msra.mxu0 0
  %189 = vmatprep.subr.bf16.mxu0 0
  %190 = vmatpush1.bf16.msra.mxu0 0
  %191 = vmatprep.subr.bf16.mxu0 0
  %192 = vmatpush1.bf16.msra.mxu0 0
  %193 = vmatprep.subr.bf16.mxu0 0
  %194 = vmatpush1.bf16.msra.mxu0 0
  %195 = vmatprep.subr.bf16.mxu0 0
  %196 = vmatpush1.bf16.msra.mxu0 0
  %197 = vmatprep.mubr.bf16.mxu0 0
  %198 = vmatmul.mubr.bf16.gmra.mrb[0].mxu0 %v109
  %v199 = vpop.f32.mrb[0].mxu0
  %v200 = vadd.f32 %v93, %v199
  %v201 = vpop.f32.mrb[0].mxu0
  %v202 = vpop.f32.mrb[0].mxu0
  %v203 = vadd.f32 %v93, %v202
  %v204 = vpop.f32.mrb[0].mxu0
  %205 = vmatprep.mubr.bf16.mxu0 0
  %206 = vmatmul.mubr.bf16.gmra.mrb[0].mxu0 %v112
  %v207 = vpop.f32.mrb[0].mxu0
  %v208 = vadd.f32 %v93, %v207
  %v209 = vpop.f32.mrb[0].mxu0
  %v210 = vpop.f32.mrb[0].mxu0
  %v211 = vadd.f32 %v93, %v210
  %v212 = vpop.f32.mrb[0].mxu0
  %213 = vmatprep.mubr.bf16.mxu0 0
  %214 = vmatmul.mubr.bf16.gmra.mrb[0].mxu0 %v115
  %v215 = vpop.f32.mrb[0].mxu0
  %v216 = vadd.f32 %v93, %v215
  %v217 = vpop.f32.mrb[0].mxu0
  %v218 = vpop.f32.mrb[0].mxu0
  %v219 = vadd.f32 %v93, %v218
  %v220 = vpop.f32.mrb[0].mxu0
  %221 = vmatprep.mubr.bf16.mxu0 0
  %222 = vmatmul.mubr.bf16.gmra.mrb[0].mxu0 %v118
  %v223 = vpop.f32.mrb[0].mxu0
  %v224 = vadd.f32 %v93, %v223
  %v225 = vpop.f32.mrb[0].mxu0
  %v226 = vpop.f32.mrb[0].mxu0
  %v227 = vadd.f32 %v93, %v226
  %v228 = vpop.f32.mrb[0].mxu0
  %229 = vmatprep.mubr.bf16.mxu0 0
  %230 = vmatmul.mubr.bf16.gmra.mrb[0].mxu0 %v121
  %v231 = vpop.f32.mrb[0].mxu0
  %v232 = vadd.f32 %v93, %v231
  %v233 = vpop.f32.mrb[0].mxu0
  %v234 = vpop.f32.mrb[0].mxu0
  %v235 = vadd.f32 %v93, %v234
  %v236 = vpop.f32.mrb[0].mxu0
  %237 = vmatprep.mubr.bf16.mxu0 0
  %238 = vmatmul.mubr.bf16.gmra.mrb[0].mxu0 %v124
  %v239 = vpop.f32.mrb[0].mxu0
  %v240 = vadd.f32 %v93, %v239
  %v241 = vpop.f32.mrb[0].mxu0
  %v242 = vpop.f32.mrb[0].mxu0
  %v243 = vadd.f32 %v93, %v242
  %v244 = vpop.f32.mrb[0].mxu0
  %245 = vmatprep.mubr.bf16.mxu0 0
  %246 = vmatmul.mubr.bf16.gmra.mrb[0].mxu0 %v127
  %v247 = vpop.f32.mrb[0].mxu0
  %v248 = vadd.f32 %v93, %v247
  %v249 = vpop.f32.mrb[0].mxu0
  %v250 = vpop.f32.mrb[0].mxu0
  %v251 = vadd.f32 %v93, %v250
  %v252 = vpop.f32.mrb[0].mxu0
  %253 = vmatprep.mubr.bf16.mxu0 0
  %254 = vmatmul.mubr.bf16.gmra.mrb[0].mxu0 %v130
  %v255 = vpop.f32.mrb[0].mxu0
  %v256 = vadd.f32 %v93, %v255
  %v257 = vpop.f32.mrb[0].mxu0
  %v258 = vpop.f32.mrb[0].mxu0
  %v259 = vadd.f32 %v93, %v258
  %v260 = vpop.f32.mrb[0].mxu0
  %261 = vmatprep.mubr.bf16.mxu0 0
  %262 = vmatmul.mubr.bf16.gmra.mrb[0].mxu0 %v133
  %v263 = vpop.f32.mrb[0].mxu0
  %v264 = vadd.f32 %v93, %v263
  %v265 = vpop.f32.mrb[0].mxu0
  %v266 = vpop.f32.mrb[0].mxu0
  %v267 = vadd.f32 %v93, %v266
  %v268 = vpop.f32.mrb[0].mxu0
  %269 = vmatprep.mubr.bf16.mxu0 0
  %270 = vmatmul.mubr.bf16.gmra.mrb[0].mxu0 %v136
  %v271 = vpop.f32.mrb[0].mxu0
  %v272 = vadd.f32 %v93, %v271
  %v273 = vpop.f32.mrb[0].mxu0
  %v274 = vpop.f32.mrb[0].mxu0
  %v275 = vadd.f32 %v93, %v274
  %v276 = vpop.f32.mrb[0].mxu0
  %277 = vmatprep.mubr.bf16.mxu0 0
  %278 = vmatmul.mubr.bf16.gmra.mrb[0].mxu0 %v139
  %v279 = vpop.f32.mrb[0].mxu0
  %v280 = vadd.f32 %v93, %v279
  %v281 = vpop.f32.mrb[0].mxu0
  %v282 = vpop.f32.mrb[0].mxu0
  %v283 = vadd.f32 %v93, %v282
  %v284 = vpop.f32.mrb[0].mxu0
  %285 = vmatprep.mubr.bf16.mxu0 0
  %286 = vmatmul.mubr.bf16.gmra.mrb[0].mxu0 %v142
  %v287 = vpop.f32.mrb[0].mxu0
  %v288 = vadd.f32 %v93, %v287
  %v289 = vpop.f32.mrb[0].mxu0
  %v290 = vpop.f32.mrb[0].mxu0
  %v291 = vadd.f32 %v93, %v290
  %v292 = vpop.f32.mrb[0].mxu0
  %293 = vmatprep.mubr.bf16.mxu0 0
  %294 = vmatmul.mubr.bf16.gmra.mrb[0].mxu0 %v145
  %v295 = vpop.f32.mrb[0].mxu0
  %v296 = vadd.f32 %v93, %v295
  %v297 = vpop.f32.mrb[0].mxu0
  %v298 = vpop.f32.mrb[0].mxu0
  %v299 = vadd.f32 %v93, %v298
  %v300 = vpop.f32.mrb[0].mxu0
  %301 = vmatprep.mubr.bf16.mxu0 0
  %302 = vmatmul.mubr.bf16.gmra.mrb[0].mxu0 %v148
  %v303 = vpop.f32.mrb[0].mxu0
  %v304 = vadd.f32 %v93, %v303
  %v305 = vpop.f32.mrb[0].mxu0
  %v306 = vpop.f32.mrb[0].mxu0
  %v307 = vadd.f32 %v93, %v306
  %v308 = vpop.f32.mrb[0].mxu0
  %309 = vmatprep.mubr.bf16.mxu0 0
  %310 = vmatmul.mubr.bf16.gmra.mrb[0].mxu0 %v151
  %v311 = vpop.f32.mrb[0].mxu0
  %v312 = vadd.f32 %v93, %v311
  %v313 = vpop.f32.mrb[0].mxu0
  %v314 = vpop.f32.mrb[0].mxu0
  %v315 = vadd.f32 %v93, %v314
  %v316 = vpop.f32.mrb[0].mxu0
  %317 = vmatprep.mubr.bf16.mxu0 0
  %318 = vmatmul.mubr.bf16.gmra.mrb[0].mxu0 %v154
  %v319 = vpop.f32.mrb[0].mxu0
  %v320 = vadd.f32 %v93, %v319
  %v321 = vpop.f32.mrb[0].mxu0
  %v322 = vpop.f32.mrb[0].mxu0
  %v323 = vadd.f32 %v93, %v322
  %v324 = vpop.f32.mrb[0].mxu0
  %325 = vmatprep.mubr.bf16.mxu0 0
  %326 = vmatmul.mubr.bf16.gmra.mrb[0].mxu0 %v157
  %v327 = vpop.f32.mrb[0].mxu0
  %v328 = vadd.f32 %v93, %v327
  %v329 = vpop.f32.mrb[0].mxu0
  %v330 = vpop.f32.mrb[0].mxu0
  %v331 = vadd.f32 %v93, %v330
  %v332 = vpop.f32.mrb[0].mxu0
  %333 = vmatprep.mubr.bf16.mxu0 0
  %334 = vmatmul.mubr.bf16.gmra.mrb[0].mxu0 %v160
  %v335 = vpop.f32.mrb[0].mxu0
  %v336 = vadd.f32 %v93, %v335
  %v337 = vpop.f32.mrb[0].mxu0
  %v338 = vpop.f32.mrb[0].mxu0
  %v339 = vadd.f32 %v93, %v338
  %v340 = vpop.f32.mrb[0].mxu0
  %341 = vmatprep.mubr.bf16.mxu0 0
  %342 = vmatmul.mubr.bf16.gmra.mrb[0].mxu0 %v163
  %v343 = vpop.f32.mrb[0].mxu0
  %v344 = vadd.f32 %v93, %v343
  %v345 = vpop.f32.mrb[0].mxu0
  %v346 = vpop.f32.mrb[0].mxu0
  %v347 = vadd.f32 %v93, %v346
  %v348 = vpop.f32.mrb[0].mxu0
  %349 = vdwg.mxu0
  %v350 = vmax.f32 %v200, 0.0
  %v351 = vmax.f32 %v203, 0.0
  %v352 = vmax.f32 %v208, 0.0
  %v353 = vmax.f32 %v211, 0.0
  %v354 = vmax.f32 %v216, 0.0
  %v355 = vmax.f32 %v219, 0.0
  %v356 = vmax.f32 %v224, 0.0
  %v357 = vmax.f32 %v227, 0.0
  %v358 = vmax.f32 %v232, 0.0
  %v359 = vmax.f32 %v235, 0.0
  %v360 = vmax.f32 %v240, 0.0
  %v361 = vmax.f32 %v243, 0.0
  %v362 = vmax.f32 %v248, 0.0
  %v363 = vmax.f32 %v251, 0.0
  %v364 = vmax.f32 %v256, 0.0
  %v365 = vmax.f32 %v259, 0.0
  %v366 = vmax.f32 %v264, 0.0
  %v367 = vmax.f32 %v267, 0.0
  %v368 = vmax.f32 %v272, 0.0
  %v369 = vmax.f32 %v275, 0.0
  %v370 = vmax.f32 %v280, 0.0
  %v371 = vmax.f32 %v283, 0.0
  %v372 = vmax.f32 %v288, 0.0
  %v373 = vmax.f32 %v291, 0.0
  %v374 = vmax.f32 %v296, 0.0
  %v375 = vmax.f32 %v299, 0.0
  %v376 = vmax.f32 %v304, 0.0
  %v377 = vmax.f32 %v307, 0.0
  %v378 = vmax.f32 %v312, 0.0
  %v379 = vmax.f32 %v315, 0.0
  %v380 = vmax.f32 %v320, 0.0
  %v381 = vmax.f32 %v323, 0.0
  %v382 = vmax.f32 %v328, 0.0
  %v383 = vmax.f32 %v331, 0.0
  %v384 = vmax.f32 %v336, 0.0
  %v385 = vmax.f32 %v339, 0.0
  %v386 = vmax.f32 %v344, 0.0
  %v387 = vmax.f32 %v347, 0.0
  %v388 = vpack.c.bf16 %v351, %v350
  %v389 = vpack.c.bf16 %v353, %v352
  %v390 = vpack.c.bf16 %v355, %v354
  %v391 = vpack.c.bf16 %v357, %v356
  %v392 = vpack.c.bf16 %v359, %v358
  %v393 = vpack.c.bf16 %v361, %v360
  %v394 = vpack.c.bf16 %v363, %v362
  %v395 = vpack.c.bf16 %v365, %v364
  %v396 = vpack.c.bf16 %v367, %v366
  %v397 = vpack.c.bf16 %v369, %v368
  %v398 = vpack.c.bf16 %v371, %v370
  %v399 = vpack.c.bf16 %v373, %v372
  %v400 = vpack.c.bf16 %v375, %v374
  %v401 = vpack.c.bf16 %v377, %v376
  %v402 = vpack.c.bf16 %v379, %v378
  %v403 = vpack.c.bf16 %v381, %v380
  %v404 = vpack.c.bf16 %v383, %v382
  %v405 = vpack.c.bf16 %v385, %v384
  %v406 = vpack.c.bf16 %v387, %v386
  %v407 = vld [vmem:[%s3] sm:$0xf]
  %v408 = vld [vmem:[%s3 + $0x4] sm:$0xf]
  %v409 = vld [vmem:[%s3 + $0x8] sm:$0xf]
  %v410 = vld [vmem:[%s3 + $0xc] sm:$0xf]
  %v411 = vld [vmem:[%s3 + $0x10] sm:$0xf]
  %v412 = vld [vmem:[%s3 + $0x14] sm:$0xf]
  %v413 = vld [vmem:[%s3 + $0x18] sm:$0xf]
  %v414 = vld [vmem:[%s3 + $0x1c] sm:$0xf]
  %v415 = vld [vmem:[%s3 + $0x20] sm:$0xf]
  %v416 = vld [vmem:[%s3 + $0x24] sm:$0xf]
  %v417 = vld [vmem:[%s3 + $0x28] sm:$0xf]
  %v418 = vld [vmem:[%s3 + $0x2c] sm:$0xf]
  %v419 = vld [vmem:[%s3 + $0x30] sm:$0xf]
  %v420 = vld [vmem:[%s3 + $0x34] sm:$0xf]
  %v421 = vld [vmem:[%s3 + $0x38] sm:$0xf]
  %v422 = vld [vmem:[%s3 + $0x3c] sm:$0xf]
  %v423 = vld [vmem:[%s4] sm:$0x1]
  %v425 = vlaneseq
  %v426 = vshrl.u32 %v425, 7
  %v427 = vsub.s32 0, %v426
  %v428 = vrot.slane %v423, %v427
  %v446 = vunpack.c.l.b16 %v407
  %v447 = vunpack.c.l.b16 %v408
  %v448 = vunpack.c.l.b16 %v409
  %v449 = vunpack.c.l.b16 %v410
  %v450 = vunpack.c.l.b16 %v411
  %v451 = vunpack.c.l.b16 %v412
  %v452 = vunpack.c.l.b16 %v413
  %v453 = vunpack.c.l.b16 %v414
  %v454 = vunpack.c.l.b16 %v415
  %v455 = vunpack.c.l.b16 %v416
  %v456 = vunpack.c.l.b16 %v417
  %v457 = vunpack.c.l.b16 %v418
  %v458 = vunpack.c.l.b16 %v419
  %v459 = vunpack.c.l.b16 %v420
  %v460 = vunpack.c.l.b16 %v421
  %v461 = vunpack.c.l.b16 %v422
  %v462 = vpack.c.b16 %v447, %v446
  %v463 = vpack.c.b16 %v449, %v448
  %v464 = vpack.c.b16 %v451, %v450
  %v465 = vpack.c.b16 %v453, %v452
  %v466 = vpack.c.b16 %v455, %v454
  %v467 = vpack.c.b16 %v457, %v456
  %v468 = vpack.c.b16 %v459, %v458
  %v469 = vpack.c.b16 %v461, %v460
  %478 = vmatprep.subr.bf16.mxu0 0
  %479 = vmatpush1.bf16.msra.mxu0 %v462
  %480 = vmatprep.subr.bf16.mxu0 0
  %481 = vmatpush1.bf16.msra.mxu0 %v463
  %482 = vmatprep.subr.bf16.mxu0 0
  %483 = vmatpush1.bf16.msra.mxu0 %v464
  %484 = vmatprep.subr.bf16.mxu0 0
  %485 = vmatpush1.bf16.msra.mxu0 %v465
  %486 = vmatprep.subr.bf16.mxu0 0
  %487 = vmatpush1.bf16.msra.mxu0 %v466
  %488 = vmatprep.subr.bf16.mxu0 0
  %489 = vmatpush1.bf16.msra.mxu0 %v467
  %490 = vmatprep.subr.bf16.mxu0 0
  %491 = vmatpush1.bf16.msra.mxu0 %v468
  %492 = vmatprep.subr.bf16.mxu0 0
  %493 = vmatpush1.bf16.msra.mxu0 %v469
  %494 = vmatprep.subr.bf16.mxu0 0
  %495 = vmatpush1.bf16.msra.mxu0 0
  %496 = vmatprep.subr.bf16.mxu0 0
  %497 = vmatpush1.bf16.msra.mxu0 0
  %498 = vmatprep.subr.bf16.mxu0 0
  %499 = vmatpush1.bf16.msra.mxu0 0
  %500 = vmatprep.subr.bf16.mxu0 0
  %501 = vmatpush1.bf16.msra.mxu0 0
  %502 = vmatprep.subr.bf16.mxu0 0
  %503 = vmatpush1.bf16.msra.mxu0 0
  %504 = vmatprep.subr.bf16.mxu0 0
  %505 = vmatpush1.bf16.msra.mxu0 0
  %506 = vmatprep.subr.bf16.mxu0 0
  %507 = vmatpush1.bf16.msra.mxu0 0
  %508 = vmatprep.subr.bf16.mxu0 0
  %509 = vmatpush1.bf16.msra.mxu0 0
  %510 = vmatprep.mubr.bf16.mxu0 0
  %511 = vmatmul.mubr.bf16.gmra.mrb[0].mxu0 %v388
  %v512 = vpop.f32.mrb[0].mxu0
  %v513 = vadd.f32 %v428, %v512
  %v514 = vpop.f32.mrb[0].mxu0
  %v515 = vpop.f32.mrb[0].mxu0
  %v516 = vadd.f32 %v428, %v515
  %v517 = vpop.f32.mrb[0].mxu0
  %518 = vmatprep.mubr.bf16.mxu0 0
  %519 = vmatmul.mubr.bf16.gmra.mrb[0].mxu0 %v389
  %v520 = vpop.f32.mrb[0].mxu0
  %v521 = vadd.f32 %v428, %v520
  %v522 = vpop.f32.mrb[0].mxu0
  %v523 = vpop.f32.mrb[0].mxu0
  %v524 = vadd.f32 %v428, %v523
  %v525 = vpop.f32.mrb[0].mxu0
  %526 = vmatprep.mubr.bf16.mxu0 0
  %527 = vmatmul.mubr.bf16.gmra.mrb[0].mxu0 %v390
  %v528 = vpop.f32.mrb[0].mxu0
  %v529 = vadd.f32 %v428, %v528
  %v530 = vpop.f32.mrb[0].mxu0
  %v531 = vpop.f32.mrb[0].mxu0
  %v532 = vadd.f32 %v428, %v531
  %v533 = vpop.f32.mrb[0].mxu0
  %534 = vmatprep.mubr.bf16.mxu0 0
  %535 = vmatmul.mubr.bf16.gmra.mrb[0].mxu0 %v391
  %v536 = vpop.f32.mrb[0].mxu0
  %v537 = vadd.f32 %v428, %v536
  %v538 = vpop.f32.mrb[0].mxu0
  %v539 = vpop.f32.mrb[0].mxu0
  %v540 = vadd.f32 %v428, %v539
  %v541 = vpop.f32.mrb[0].mxu0
  %542 = vmatprep.mubr.bf16.mxu0 0
  %543 = vmatmul.mubr.bf16.gmra.mrb[0].mxu0 %v392
  %v544 = vpop.f32.mrb[0].mxu0
  %v545 = vadd.f32 %v428, %v544
  %v546 = vpop.f32.mrb[0].mxu0
  %v547 = vpop.f32.mrb[0].mxu0
  %v548 = vadd.f32 %v428, %v547
  %v549 = vpop.f32.mrb[0].mxu0
  %550 = vmatprep.mubr.bf16.mxu0 0
  %551 = vmatmul.mubr.bf16.gmra.mrb[0].mxu0 %v393
  %v552 = vpop.f32.mrb[0].mxu0
  %v553 = vadd.f32 %v428, %v552
  %v554 = vpop.f32.mrb[0].mxu0
  %v555 = vpop.f32.mrb[0].mxu0
  %v556 = vadd.f32 %v428, %v555
  %v557 = vpop.f32.mrb[0].mxu0
  %558 = vmatprep.mubr.bf16.mxu0 0
  %559 = vmatmul.mubr.bf16.gmra.mrb[0].mxu0 %v394
  %v560 = vpop.f32.mrb[0].mxu0
  %v561 = vadd.f32 %v428, %v560
  %v562 = vpop.f32.mrb[0].mxu0
  %v563 = vpop.f32.mrb[0].mxu0
  %v564 = vadd.f32 %v428, %v563
  %v565 = vpop.f32.mrb[0].mxu0
  %566 = vmatprep.mubr.bf16.mxu0 0
  %567 = vmatmul.mubr.bf16.gmra.mrb[0].mxu0 %v395
  %v568 = vpop.f32.mrb[0].mxu0
  %v569 = vadd.f32 %v428, %v568
  %v570 = vpop.f32.mrb[0].mxu0
  %v571 = vpop.f32.mrb[0].mxu0
  %v572 = vadd.f32 %v428, %v571
  %v573 = vpop.f32.mrb[0].mxu0
  %574 = vmatprep.mubr.bf16.mxu0 0
  %575 = vmatmul.mubr.bf16.gmra.mrb[0].mxu0 %v396
  %v576 = vpop.f32.mrb[0].mxu0
  %v577 = vadd.f32 %v428, %v576
  %v578 = vpop.f32.mrb[0].mxu0
  %v579 = vpop.f32.mrb[0].mxu0
  %v580 = vadd.f32 %v428, %v579
  %v581 = vpop.f32.mrb[0].mxu0
  %582 = vmatprep.mubr.bf16.mxu0 0
  %583 = vmatmul.mubr.bf16.gmra.mrb[0].mxu0 %v397
  %v584 = vpop.f32.mrb[0].mxu0
  %v585 = vadd.f32 %v428, %v584
  %v586 = vpop.f32.mrb[0].mxu0
  %v587 = vpop.f32.mrb[0].mxu0
  %v588 = vadd.f32 %v428, %v587
  %v589 = vpop.f32.mrb[0].mxu0
  %590 = vmatprep.mubr.bf16.mxu0 0
  %591 = vmatmul.mubr.bf16.gmra.mrb[0].mxu0 %v398
  %v592 = vpop.f32.mrb[0].mxu0
  %v593 = vadd.f32 %v428, %v592
  %v594 = vpop.f32.mrb[0].mxu0
  %v595 = vpop.f32.mrb[0].mxu0
  %v596 = vadd.f32 %v428, %v595
  %v597 = vpop.f32.mrb[0].mxu0
  %598 = vmatprep.mubr.bf16.mxu0 0
  %599 = vmatmul.mubr.bf16.gmra.mrb[0].mxu0 %v399
  %v600 = vpop.f32.mrb[0].mxu0
  %v601 = vadd.f32 %v428, %v600
  %v602 = vpop.f32.mrb[0].mxu0
  %v603 = vpop.f32.mrb[0].mxu0
  %v604 = vadd.f32 %v428, %v603
  %v605 = vpop.f32.mrb[0].mxu0
  %606 = vmatprep.mubr.bf16.mxu0 0
  %607 = vmatmul.mubr.bf16.gmra.mrb[0].mxu0 %v400
  %v608 = vpop.f32.mrb[0].mxu0
  %v609 = vadd.f32 %v428, %v608
  %v610 = vpop.f32.mrb[0].mxu0
  %v611 = vpop.f32.mrb[0].mxu0
  %v612 = vadd.f32 %v428, %v611
  %v613 = vpop.f32.mrb[0].mxu0
  %614 = vmatprep.mubr.bf16.mxu0 0
  %615 = vmatmul.mubr.bf16.gmra.mrb[0].mxu0 %v401
  %v616 = vpop.f32.mrb[0].mxu0
  %v617 = vadd.f32 %v428, %v616
  %v618 = vpop.f32.mrb[0].mxu0
  %v619 = vpop.f32.mrb[0].mxu0
  %v620 = vadd.f32 %v428, %v619
  %v621 = vpop.f32.mrb[0].mxu0
  %622 = vmatprep.mubr.bf16.mxu0 0
  %623 = vmatmul.mubr.bf16.gmra.mrb[0].mxu0 %v402
  %v624 = vpop.f32.mrb[0].mxu0
  %v625 = vadd.f32 %v428, %v624
  %v626 = vpop.f32.mrb[0].mxu0
  %v627 = vpop.f32.mrb[0].mxu0
  %v628 = vadd.f32 %v428, %v627
  %v629 = vpop.f32.mrb[0].mxu0
  %630 = vmatprep.mubr.bf16.mxu0 0
  %631 = vmatmul.mubr.bf16.gmra.mrb[0].mxu0 %v403
  %v632 = vpop.f32.mrb[0].mxu0
  %v633 = vadd.f32 %v428, %v632
  %v634 = vpop.f32.mrb[0].mxu0
  %v635 = vpop.f32.mrb[0].mxu0
  %v636 = vadd.f32 %v428, %v635
  %v637 = vpop.f32.mrb[0].mxu0
  %638 = vmatprep.mubr.bf16.mxu0 0
  %639 = vmatmul.mubr.bf16.gmra.mrb[0].mxu0 %v404
  %v640 = vpop.f32.mrb[0].mxu0
  %v641 = vadd.f32 %v428, %v640
  %v642 = vpop.f32.mrb[0].mxu0
  %v643 = vpop.f32.mrb[0].mxu0
  %v644 = vadd.f32 %v428, %v643
  %v645 = vpop.f32.mrb[0].mxu0
  %646 = vmatprep.mubr.bf16.mxu0 0
  %647 = vmatmul.mubr.bf16.gmra.mrb[0].mxu0 %v405
  %v648 = vpop.f32.mrb[0].mxu0
  %v649 = vadd.f32 %v428, %v648
  %v650 = vpop.f32.mrb[0].mxu0
  %v651 = vpop.f32.mrb[0].mxu0
  %v652 = vadd.f32 %v428, %v651
  %v653 = vpop.f32.mrb[0].mxu0
  %654 = vmatprep.mubr.bf16.mxu0 0
  %655 = vmatmul.mubr.bf16.gmra.mrb[0].mxu0 %v406
  %v656 = vpop.f32.mrb[0].mxu0
  %v657 = vadd.f32 %v428, %v656
  %v658 = vpop.f32.mrb[0].mxu0
  %v659 = vpop.f32.mrb[0].mxu0
  %v660 = vadd.f32 %v428, %v659
  %v661 = vpop.f32.mrb[0].mxu0
  %662 = vdwg.mxu0
  %v663 = vmax.f32 %v513, 0.0
  %v664 = vmax.f32 %v516, 0.0
  %v665 = vmax.f32 %v521, 0.0
  %v666 = vmax.f32 %v524, 0.0
  %v667 = vmax.f32 %v529, 0.0
  %v668 = vmax.f32 %v532, 0.0
  %v669 = vmax.f32 %v537, 0.0
  %v670 = vmax.f32 %v540, 0.0
  %v671 = vmax.f32 %v545, 0.0
  %v672 = vmax.f32 %v548, 0.0
  %v673 = vmax.f32 %v553, 0.0
  %v674 = vmax.f32 %v556, 0.0
  %v675 = vmax.f32 %v561, 0.0
  %v676 = vmax.f32 %v564, 0.0
  %v677 = vmax.f32 %v569, 0.0
  %v678 = vmax.f32 %v572, 0.0
  %v679 = vmax.f32 %v577, 0.0
  %v680 = vmax.f32 %v580, 0.0
  %v681 = vmax.f32 %v585, 0.0
  %v682 = vmax.f32 %v588, 0.0
  %v683 = vmax.f32 %v593, 0.0
  %v684 = vmax.f32 %v596, 0.0
  %v685 = vmax.f32 %v601, 0.0
  %v686 = vmax.f32 %v604, 0.0
  %v687 = vmax.f32 %v609, 0.0
  %v688 = vmax.f32 %v612, 0.0
  %v689 = vmax.f32 %v617, 0.0
  %v690 = vmax.f32 %v620, 0.0
  %v691 = vmax.f32 %v625, 0.0
  %v692 = vmax.f32 %v628, 0.0
  %v693 = vmax.f32 %v633, 0.0
  %v694 = vmax.f32 %v636, 0.0
  %v695 = vmax.f32 %v641, 0.0
  %v696 = vmax.f32 %v644, 0.0
  %v697 = vmax.f32 %v649, 0.0
  %v698 = vmax.f32 %v652, 0.0
  %v699 = vmax.f32 %v657, 0.0
  %v700 = vmax.f32 %v660, 0.0
  %v701 = vpack.c.bf16 %v664, %v663
  %v702 = vpack.c.bf16 %v666, %v665
  %v703 = vpack.c.bf16 %v668, %v667
  %v704 = vpack.c.bf16 %v670, %v669
  %v705 = vpack.c.bf16 %v672, %v671
  %v706 = vpack.c.bf16 %v674, %v673
  %v707 = vpack.c.bf16 %v676, %v675
  %v708 = vpack.c.bf16 %v678, %v677
  %v709 = vpack.c.bf16 %v680, %v679
  %v710 = vpack.c.bf16 %v682, %v681
  %v711 = vpack.c.bf16 %v684, %v683
  %v712 = vpack.c.bf16 %v686, %v685
  %v713 = vpack.c.bf16 %v688, %v687
  %v714 = vpack.c.bf16 %v690, %v689
  %v715 = vpack.c.bf16 %v692, %v691
  %v716 = vpack.c.bf16 %v694, %v693
  %v717 = vpack.c.bf16 %v696, %v695
  %v718 = vpack.c.bf16 %v698, %v697
  %v719 = vpack.c.bf16 %v700, %v699
  %v720 = vld [vmem:[%s5] sm:$0xf]
  %v721 = vld [vmem:[%s5 + $0x4] sm:$0xf]
  %v722 = vld [vmem:[%s5 + $0x8] sm:$0xf]
  %v723 = vld [vmem:[%s5 + $0xc] sm:$0xf]
  %v724 = vld [vmem:[%s5 + $0x10] sm:$0xf]
  %v725 = vld [vmem:[%s5 + $0x14] sm:$0xf]
  %v726 = vld [vmem:[%s5 + $0x18] sm:$0xf]
  %v727 = vld [vmem:[%s5 + $0x1c] sm:$0xf]
  %v728 = vld [vmem:[%s5 + $0x20] sm:$0xf]
  %v729 = vld [vmem:[%s5 + $0x24] sm:$0xf]
  %v730 = vld [vmem:[%s5 + $0x28] sm:$0xf]
  %v731 = vld [vmem:[%s5 + $0x2c] sm:$0xf]
  %v732 = vld [vmem:[%s5 + $0x30] sm:$0xf]
  %v733 = vld [vmem:[%s5 + $0x34] sm:$0xf]
  %v734 = vld [vmem:[%s5 + $0x38] sm:$0xf]
  %v735 = vld [vmem:[%s5 + $0x3c] sm:$0xf]
  %v736 = vld [vmem:[%s6] sm:$0x1]
  %v738 = vlaneseq
  %v739 = vshrl.u32 %v738, 7
  %v740 = vsub.s32 0, %v739
  %v741 = vrot.slane %v736, %v740
  %v759 = vunpack.c.l.b16 %v720
  %v760 = vunpack.c.l.b16 %v721
  %v761 = vunpack.c.l.b16 %v722
  %v762 = vunpack.c.l.b16 %v723
  %v763 = vunpack.c.l.b16 %v724
  %v764 = vunpack.c.l.b16 %v725
  %v765 = vunpack.c.l.b16 %v726
  %v766 = vunpack.c.l.b16 %v727
  %v767 = vunpack.c.l.b16 %v728
  %v768 = vunpack.c.l.b16 %v729
  %v769 = vunpack.c.l.b16 %v730
  %v770 = vunpack.c.l.b16 %v731
  %v771 = vunpack.c.l.b16 %v732
  %v772 = vunpack.c.l.b16 %v733
  %v773 = vunpack.c.l.b16 %v734
  %v774 = vunpack.c.l.b16 %v735
  %v775 = vpack.c.b16 %v760, %v759
  %v776 = vpack.c.b16 %v762, %v761
  %v777 = vpack.c.b16 %v764, %v763
  %v778 = vpack.c.b16 %v766, %v765
  %v779 = vpack.c.b16 %v768, %v767
  %v780 = vpack.c.b16 %v770, %v769
  %v781 = vpack.c.b16 %v772, %v771
  %v782 = vpack.c.b16 %v774, %v773
  %791 = vmatprep.subr.bf16.mxu0 0
  %792 = vmatpush1.bf16.msra.mxu0 %v775
  %793 = vmatprep.subr.bf16.mxu0 0
  %794 = vmatpush1.bf16.msra.mxu0 %v776
  %795 = vmatprep.subr.bf16.mxu0 0
  %796 = vmatpush1.bf16.msra.mxu0 %v777
  %797 = vmatprep.subr.bf16.mxu0 0
  %798 = vmatpush1.bf16.msra.mxu0 %v778
  %799 = vmatprep.subr.bf16.mxu0 0
  %800 = vmatpush1.bf16.msra.mxu0 %v779
  %801 = vmatprep.subr.bf16.mxu0 0
  %802 = vmatpush1.bf16.msra.mxu0 %v780
  %803 = vmatprep.subr.bf16.mxu0 0
  %804 = vmatpush1.bf16.msra.mxu0 %v781
  %805 = vmatprep.subr.bf16.mxu0 0
  %806 = vmatpush1.bf16.msra.mxu0 %v782
  %807 = vmatprep.subr.bf16.mxu0 0
  %808 = vmatpush1.bf16.msra.mxu0 0
  %809 = vmatprep.subr.bf16.mxu0 0
  %810 = vmatpush1.bf16.msra.mxu0 0
  %811 = vmatprep.subr.bf16.mxu0 0
  %812 = vmatpush1.bf16.msra.mxu0 0
  %813 = vmatprep.subr.bf16.mxu0 0
  %814 = vmatpush1.bf16.msra.mxu0 0
  %815 = vmatprep.subr.bf16.mxu0 0
  %816 = vmatpush1.bf16.msra.mxu0 0
  %817 = vmatprep.subr.bf16.mxu0 0
  %818 = vmatpush1.bf16.msra.mxu0 0
  %819 = vmatprep.subr.bf16.mxu0 0
  %820 = vmatpush1.bf16.msra.mxu0 0
  %821 = vmatprep.subr.bf16.mxu0 0
  %822 = vmatpush1.bf16.msra.mxu0 0
  %823 = vmatprep.mubr.bf16.mxu0 0
  %824 = vmatmul.mubr.bf16.gmra.mrb[0].mxu0 %v701
  %v825 = vpop.f32.mrb[0].mxu0
  %v826 = vadd.f32 %v741, %v825
  %v827 = vpop.f32.mrb[0].mxu0
  %v828 = vpop.f32.mrb[0].mxu0
  %v829 = vadd.f32 %v741, %v828
  %v830 = vpop.f32.mrb[0].mxu0
  %831 = vmatprep.mubr.bf16.mxu0 0
  %832 = vmatmul.mubr.bf16.gmra.mrb[0].mxu0 %v702
  %v833 = vpop.f32.mrb[0].mxu0
  %v834 = vadd.f32 %v741, %v833
  %v835 = vpop.f32.mrb[0].mxu0
  %v836 = vpop.f32.mrb[0].mxu0
  %v837 = vadd.f32 %v741, %v836
  %v838 = vpop.f32.mrb[0].mxu0
  %839 = vmatprep.mubr.bf16.mxu0 0
  %840 = vmatmul.mubr.bf16.gmra.mrb[0].mxu0 %v703
  %v841 = vpop.f32.mrb[0].mxu0
  %v842 = vadd.f32 %v741, %v841
  %v843 = vpop.f32.mrb[0].mxu0
  %v844 = vpop.f32.mrb[0].mxu0
  %v845 = vadd.f32 %v741, %v844
  %v846 = vpop.f32.mrb[0].mxu0
  %847 = vmatprep.mubr.bf16.mxu0 0
  %848 = vmatmul.mubr.bf16.gmra.mrb[0].mxu0 %v704
  %v849 = vpop.f32.mrb[0].mxu0
  %v850 = vadd.f32 %v741, %v849
  %v851 = vpop.f32.mrb[0].mxu0
  %v852 = vpop.f32.mrb[0].mxu0
  %v853 = vadd.f32 %v741, %v852
  %v854 = vpop.f32.mrb[0].mxu0
  %855 = vmatprep.mubr.bf16.mxu0 0
  %856 = vmatmul.mubr.bf16.gmra.mrb[0].mxu0 %v705
  %v857 = vpop.f32.mrb[0].mxu0
  %v858 = vadd.f32 %v741, %v857
  %v859 = vpop.f32.mrb[0].mxu0
  %v860 = vpop.f32.mrb[0].mxu0
  %v861 = vadd.f32 %v741, %v860
  %v862 = vpop.f32.mrb[0].mxu0
  %863 = vmatprep.mubr.bf16.mxu0 0
  %864 = vmatmul.mubr.bf16.gmra.mrb[0].mxu0 %v706
  %v865 = vpop.f32.mrb[0].mxu0
  %v866 = vadd.f32 %v741, %v865
  %v867 = vpop.f32.mrb[0].mxu0
  %v868 = vpop.f32.mrb[0].mxu0
  %v869 = vadd.f32 %v741, %v868
  %v870 = vpop.f32.mrb[0].mxu0
  %871 = vmatprep.mubr.bf16.mxu0 0
  %872 = vmatmul.mubr.bf16.gmra.mrb[0].mxu0 %v707
  %v873 = vpop.f32.mrb[0].mxu0
  %v874 = vadd.f32 %v741, %v873
  %v875 = vpop.f32.mrb[0].mxu0
  %v876 = vpop.f32.mrb[0].mxu0
  %v877 = vadd.f32 %v741, %v876
  %v878 = vpop.f32.mrb[0].mxu0
  %879 = vmatprep.mubr.bf16.mxu0 0
  %880 = vmatmul.mubr.bf16.gmra.mrb[0].mxu0 %v708
  %v881 = vpop.f32.mrb[0].mxu0
  %v882 = vadd.f32 %v741, %v881
  %v883 = vpop.f32.mrb[0].mxu0
  %v884 = vpop.f32.mrb[0].mxu0
  %v885 = vadd.f32 %v741, %v884
  %v886 = vpop.f32.mrb[0].mxu0
  %887 = vmatprep.mubr.bf16.mxu0 0
  %888 = vmatmul.mubr.bf16.gmra.mrb[0].mxu0 %v709
  %v889 = vpop.f32.mrb[0].mxu0
  %v890 = vadd.f32 %v741, %v889
  %v891 = vpop.f32.mrb[0].mxu0
  %v892 = vpop.f32.mrb[0].mxu0
  %v893 = vadd.f32 %v741, %v892
  %v894 = vpop.f32.mrb[0].mxu0
  %895 = vmatprep.mubr.bf16.mxu0 0
  %896 = vmatmul.mubr.bf16.gmra.mrb[0].mxu0 %v710
  %v897 = vpop.f32.mrb[0].mxu0
  %v898 = vadd.f32 %v741, %v897
  %v899 = vpop.f32.mrb[0].mxu0
  %v900 = vpop.f32.mrb[0].mxu0
  %v901 = vadd.f32 %v741, %v900
  %v902 = vpop.f32.mrb[0].mxu0
  %903 = vmatprep.mubr.bf16.mxu0 0
  %904 = vmatmul.mubr.bf16.gmra.mrb[0].mxu0 %v711
  %v905 = vpop.f32.mrb[0].mxu0
  %v906 = vadd.f32 %v741, %v905
  %v907 = vpop.f32.mrb[0].mxu0
  %v908 = vpop.f32.mrb[0].mxu0
  %v909 = vadd.f32 %v741, %v908
  %v910 = vpop.f32.mrb[0].mxu0
  %911 = vmatprep.mubr.bf16.mxu0 0
  %912 = vmatmul.mubr.bf16.gmra.mrb[0].mxu0 %v712
  %v913 = vpop.f32.mrb[0].mxu0
  %v914 = vadd.f32 %v741, %v913
  %v915 = vpop.f32.mrb[0].mxu0
  %v916 = vpop.f32.mrb[0].mxu0
  %v917 = vadd.f32 %v741, %v916
  %v918 = vpop.f32.mrb[0].mxu0
  %919 = vmatprep.mubr.bf16.mxu0 0
  %920 = vmatmul.mubr.bf16.gmra.mrb[0].mxu0 %v713
  %v921 = vpop.f32.mrb[0].mxu0
  %v922 = vadd.f32 %v741, %v921
  %v923 = vpop.f32.mrb[0].mxu0
  %v924 = vpop.f32.mrb[0].mxu0
  %v925 = vadd.f32 %v741, %v924
  %v926 = vpop.f32.mrb[0].mxu0
  %927 = vmatprep.mubr.bf16.mxu0 0
  %928 = vmatmul.mubr.bf16.gmra.mrb[0].mxu0 %v714
  %v929 = vpop.f32.mrb[0].mxu0
  %v930 = vadd.f32 %v741, %v929
  %v931 = vpop.f32.mrb[0].mxu0
  %v932 = vpop.f32.mrb[0].mxu0
  %v933 = vadd.f32 %v741, %v932
  %v934 = vpop.f32.mrb[0].mxu0
  %935 = vmatprep.mubr.bf16.mxu0 0
  %936 = vmatmul.mubr.bf16.gmra.mrb[0].mxu0 %v715
  %v937 = vpop.f32.mrb[0].mxu0
  %v938 = vadd.f32 %v741, %v937
  %v939 = vpop.f32.mrb[0].mxu0
  %v940 = vpop.f32.mrb[0].mxu0
  %v941 = vadd.f32 %v741, %v940
  %v942 = vpop.f32.mrb[0].mxu0
  %943 = vmatprep.mubr.bf16.mxu0 0
  %944 = vmatmul.mubr.bf16.gmra.mrb[0].mxu0 %v716
  %v945 = vpop.f32.mrb[0].mxu0
  %v946 = vadd.f32 %v741, %v945
  %v947 = vpop.f32.mrb[0].mxu0
  %v948 = vpop.f32.mrb[0].mxu0
  %v949 = vadd.f32 %v741, %v948
  %v950 = vpop.f32.mrb[0].mxu0
  %951 = vmatprep.mubr.bf16.mxu0 0
  %952 = vmatmul.mubr.bf16.gmra.mrb[0].mxu0 %v717
  %v953 = vpop.f32.mrb[0].mxu0
  %v954 = vadd.f32 %v741, %v953
  %v955 = vpop.f32.mrb[0].mxu0
  %v956 = vpop.f32.mrb[0].mxu0
  %v957 = vadd.f32 %v741, %v956
  %v958 = vpop.f32.mrb[0].mxu0
  %959 = vmatprep.mubr.bf16.mxu0 0
  %960 = vmatmul.mubr.bf16.gmra.mrb[0].mxu0 %v718
  %v961 = vpop.f32.mrb[0].mxu0
  %v962 = vadd.f32 %v741, %v961
  %v963 = vpop.f32.mrb[0].mxu0
  %v964 = vpop.f32.mrb[0].mxu0
  %v965 = vadd.f32 %v741, %v964
  %v966 = vpop.f32.mrb[0].mxu0
  %967 = vmatprep.mubr.bf16.mxu0 0
  %968 = vmatmul.mubr.bf16.gmra.mrb[0].mxu0 %v719
  %v969 = vpop.f32.mrb[0].mxu0
  %v970 = vadd.f32 %v741, %v969
  %v971 = vpop.f32.mrb[0].mxu0
  %v972 = vpop.f32.mrb[0].mxu0
  %v973 = vadd.f32 %v741, %v972
  %v974 = vpop.f32.mrb[0].mxu0
  %975 = vdwg.mxu0
  %976 = vst [vmem:[%s7] sm:$0xff] %v826
  %977 = vst [vmem:[%s7 + $0x8] sm:$0xff] %v829
  %978 = vst [vmem:[%s7 + $0x10] sm:$0xff] %v834
  %979 = vst [vmem:[%s7 + $0x18] sm:$0xff] %v837
  %980 = vst [vmem:[%s7 + $0x20] sm:$0xff] %v842
  %981 = vst [vmem:[%s7 + $0x28] sm:$0xff] %v845
  %982 = vst [vmem:[%s7 + $0x30] sm:$0xff] %v850
  %983 = vst [vmem:[%s7 + $0x38] sm:$0xff] %v853
  %984 = vst [vmem:[%s7 + $0x40] sm:$0xff] %v858
  %985 = vst [vmem:[%s7 + $0x48] sm:$0xff] %v861
  %986 = vst [vmem:[%s7 + $0x50] sm:$0xff] %v866
  %987 = vst [vmem:[%s7 + $0x58] sm:$0xff] %v869
  %988 = vst [vmem:[%s7 + $0x60] sm:$0xff] %v874
  %989 = vst [vmem:[%s7 + $0x68] sm:$0xff] %v877
  %990 = vst [vmem:[%s7 + $0x70] sm:$0xff] %v882
  %991 = vst [vmem:[%s7 + $0x78] sm:$0xff] %v885
  %992 = vst [vmem:[%s7 + $0x80] sm:$0xff] %v890
  %993 = vst [vmem:[%s7 + $0x88] sm:$0xff] %v893
  %994 = vst [vmem:[%s7 + $0x90] sm:$0xff] %v898
  %995 = vst [vmem:[%s7 + $0x98] sm:$0xff] %v901
  %996 = vst [vmem:[%s7 + $0xa0] sm:$0xff] %v906
  %997 = vst [vmem:[%s7 + $0xa8] sm:$0xff] %v909
  %998 = vst [vmem:[%s7 + $0xb0] sm:$0xff] %v914
  %999 = vst [vmem:[%s7 + $0xb8] sm:$0xff] %v917
  %1000 = vst [vmem:[%s7 + $0xc0] sm:$0xff] %v922
  %1001 = vst [vmem:[%s7 + $0xc8] sm:$0xff] %v925
  %1002 = vst [vmem:[%s7 + $0xd0] sm:$0xff] %v930
  %1003 = vst [vmem:[%s7 + $0xd8] sm:$0xff] %v933
  %1004 = vst [vmem:[%s7 + $0xe0] sm:$0xff] %v938
  %1005 = vst [vmem:[%s7 + $0xe8] sm:$0xff] %v941
  %1006 = vst [vmem:[%s7 + $0xf0] sm:$0xff] %v946
  %1007 = vst [vmem:[%s7 + $0xf8] sm:$0xff] %v949
  %1008 = vst [vmem:[%s7 + $0x100] sm:$0xff] %v954
  %1009 = vst [vmem:[%s7 + $0x108] sm:$0xff] %v957
  %1010 = vst [vmem:[%s7 + $0x110] sm:$0xff] %v962
  %1011 = vst [vmem:[%s7 + $0x118] sm:$0xff] %v965
  %1012 = vst [vmem:[%s7 + $0x120] sm:$0xff] %v970
  %1013 = vst [vmem:[%s7 + $0x128] sm:$0xff] %v973
  // Predicated region
  $region30: #{_lambda_.1} parent=0 // pred_check
    _
  $region31: #{_lambda_.1} parent=0 // pred_check_branch
    %1015 = sbr.rel (0) target = $region33
  $region32: #{_lambda_.1} parent=0 // pred_region
    _
  $region33: #{_lambda_.1} parent=0 // pred_fallthru
    _
  // Predicated region
  $region34: #{_lambda_.1} parent=0 // pred_check
    _
  $region35: #{_lambda_.1} parent=0 // pred_check_branch
    %1017 = sbr.rel (0) target = $region37
  $region36: #{_lambda_.1} parent=0 // pred_region
    _
  $region37: #{_lambda_.1} parent=0 // pred_fallthru
    _

</llo_original>
